<compile_context>
chip_gen: v7x
topology: tpu7x:2x2x1
jax: 0.10.0
libtpu: 0.0.40
codegen_flags: <defaults>
</compile_context>

<pallas_src>
import jax
import jax.numpy as jnp
from jax.experimental import pallas as pl
from jax.experimental.pallas import tpu as pltpu


def _round_up(x, m):
    return ((x + m - 1) // m) * m


def _cdiv(a, b):
    return (a + b - 1) // b


# ---------------------------------------------------------------------------
# Kernel
# ---------------------------------------------------------------------------
def _bin_linear_kernel(x_ref, w_ref, b_ref, o_ref):
    k = pl.program_id(2)

    @pl.when(k == 0)
    def _():
        # Fold the bias into the accumulator init (output block is resident
        # across the k reduction axis).
        o_ref[...] = jnp.broadcast_to(b_ref[...], o_ref.shape).astype(o_ref.dtype)

    # Binarize the activation tile on the VPU with target-dtype constants.
    # (0 maps to -1, matching torch.where(x > 0, 1, -1).)
    one = jnp.ones((), dtype=jnp.bfloat16)
    xb = jnp.where(x_ref[...] > 0, one, -one)                 # [TM, TK] bf16
    # Weight tile is int8 in {-1, 0(+pad), +1}; widen to bf16 for the MXU.
    wb = w_ref[...].astype(jnp.bfloat16)                       # [TK, TN] bf16
    o_ref[...] += jnp.dot(xb, wb, preferred_element_type=jnp.float32)


# ---------------------------------------------------------------------------
# Tiling plan (generation-aware)
# ---------------------------------------------------------------------------
def make_plan(batch, in_features, out_features):
    try:
        vmem_cap = int(pltpu.get_tpu_info().vmem_capacity_bytes)
    except Exception:
        vmem_cap = 64 * 1024 * 1024      # conservative (v7x-sized) fallback

    big_vmem = vmem_cap >= 100 * 1024 * 1024   # v5e / v6e: 128 MiB; v7x: 64 MiB
    tk_cap = 2048 if big_vmem else 1536
    tn_cap = 2048 if big_vmem else 1536

    # M: one i-block for typical inference batches so W streams from HBM once.
    pB0 = _round_up(batch, 8)
    n_i = max(1, _cdiv(pB0, 256))
    TM = _round_up(_cdiv(pB0, n_i), 8)

    # K: biggest 128-multiple tile under the cap, minimal padding.
    pK0 = _round_up(in_features, 128)
    n_k = max(1, _cdiv(pK0, tk_cap))
    TK = _round_up(_cdiv(pK0, n_k), 128)

    # N: same, but guarantee >= 2 parallel blocks when n_i == 1 so v7x's
    # second TensorCore is not idle (shrink TN, not TM).
    pN0 = _round_up(out_features, 128)
    min_j = 2 if (n_i == 1 and pN0 >= 256) else 1
    n_j = max(min_j, _cdiv(pN0, tn_cap))
    TN = _round_up(_cdiv(pN0, n_j), 128)

    pB, pK, pN = n_i * TM, n_k * TK, n_j * TN

    # Double-buffered footprint: x (bf16) + W (int8) + out (f32) + bias.
    footprint = 2 * (TM * TK * 2 + TK * TN * 1 + TM * TN * 4 + TN * 4)
    vmem_limit = int(min(vmem_cap * 3 // 4,
                         max(32 * 1024 * 1024, 2 * footprint + (8 << 20))))

    return dict(B=batch, K=in_features, N=out_features,
                TM=TM, TN=TN, TK=TK, pB=pB, pK=pK, pN=pN,
                grid=(n_i, n_j, n_k), vmem_limit=vmem_limit)


# ---------------------------------------------------------------------------
# One-time parameter preparation (weights/bias are inference-time constants)
# ---------------------------------------------------------------------------
def prepare_params(weight, bias, plan):
    """weight: [out_features, in_features] float (F.linear layout), bias: [out_features].

    Returns (w_int8_kn_padded [pK, pN], bias_f32_padded [1, pN]).
    Done once at load time -- analogue of the module caching weight.org and
    binarizing it; the per-call hot path never touches the full weight.
    """
    N, K = weight.shape
    assert K == plan["K"] and N == plan["N"], (weight.shape, plan["K"], plan["N"])
    wb = jnp.where(weight > 0, jnp.int8(1), jnp.int8(-1))        # [N, K] int8
    wb = wb.T                                                    # [K, N]
    wb = jnp.pad(wb, ((0, plan["pK"] - K), (0, plan["pN"] - N)))  # pad rows are 0
    bp = jnp.pad(bias.astype(jnp.float32), ((0, plan["pN"] - N),))
    return wb, bp.reshape(1, plan["pN"])


# ---------------------------------------------------------------------------
# Per-call wrapper
# ---------------------------------------------------------------------------
def binarize_linear(x, w_pad, b_pad, plan):
    """x: [B, K] float -> [B, N] float32.  w_pad / b_pad come from prepare_params."""
    B, K = x.shape
    assert B == plan["B"] and K == plan["K"], (x.shape, plan["B"], plan["K"])
    TM, TN, TK = plan["TM"], plan["TN"], plan["TK"]
    pB, pK, pN = plan["pB"], plan["pK"], plan["pN"]
    n_i, n_j, n_k = plan["grid"]

    # Stage activations as bf16 (only the sign matters; f32 positives below
    # ~9e-41 would flush to +0 and binarize to -1 -- practically irrelevant).
    # Padded x columns binarize to -1 but the matching padded weight rows are
    # exactly 0, so they contribute nothing; padded batch rows are sliced off.
    xp = jnp.pad(x.astype(jnp.bfloat16), ((0, pB - B), (0, pK - K)))

    cost = pl.CostEstimate(
        flops=2 * pB * pN * pK,
        transcendentals=0,
        bytes_accessed=(pB * pK * 2) * n_j          # x re-streamed per j-block
                       + (pK * pN * 1) * n_i        # int8 W re-streamed per i-block
                       + pN * 4 * n_i               # bias
                       + pB * pN * 4,               # output
    )

    out = pl.pallas_call(
        _bin_linear_kernel,
        out_shape=jax.ShapeDtypeStruct((pB, pN), jnp.float32),
        grid_spec=pltpu.PrefetchScalarGridSpec(
            num_scalar_prefetch=0,
            grid=(n_i, n_j, n_k),
            in_specs=[
                pl.BlockSpec((TM, TK), lambda i, j, k: (i, k)),   # x  bf16
                pl.BlockSpec((TK, TN), lambda i, j, k: (k, j)),   # W  int8 [K, N]
                pl.BlockSpec((1, TN), lambda i, j, k: (0, j)),    # bias f32
            ],
            out_specs=pl.BlockSpec((TM, TN), lambda i, j, k: (i, j)),
        ),
        compiler_params=pltpu.CompilerParams(
            dimension_semantics=("parallel", "parallel", "arbitrary"),
            vmem_limit_bytes=plan["vmem_limit"]),
        cost_estimate=cost,
    )(xp, w_pad, b_pad)

    return out[:B, :plan["N"]]


# ---------------------------------------------------------------------------
# Reference + demo
# ---------------------------------------------------------------------------
def reference(x, weight, bias):
    xb = jnp.where(x > 0, 1.0, -1.0)
    wb = jnp.where(weight > 0, 1.0, -1.0)
    return xb @ wb.T + bias[None, :]


if __name__ == "__main__":
    # Small, deliberately ragged shapes.  Note: the original module declares
    # Parameter(in_features, out_features) but calls F.linear, which requires
    # [out_features, in_features]; we implement the F.linear semantics.
    # K > TK cap would not trigger at these sizes on big-VMEM chips, so K=3000
    # is chosen to exercise the multi-step k reduction (n_k == 2) while staying
    # small; batch=22 exercises batch padding, N=500 exercises N padding and
    # the >=2 j-block split.
    batch, in_features, out_features = 22, 3000, 500

    key = jax.random.PRNGKey(0)
    kx, kw, kb = jax.random.split(key, 3)

    x = jax.random.normal(kx, (batch, in_features), dtype=jnp.float32)
    weight = jax.random.normal(kw, (out_features, in_features), dtype=jnp.float32)
    bias = jax.random.normal(kb, (out_features,), dtype=jnp.float32)

    plan = make_plan(batch, in_features, out_features)
    # One-time weight/bias prep (binarize -> int8, transpose, pad) at load time.
    w_pad, b_pad = prepare_params(weight, bias, plan)

    out = binarize_linear(x, w_pad, b_pad, plan)
    out = jax.block_until_ready(out)

    ref = reference(x, weight, bias)
    assert out.shape == (batch, out_features), out.shape
    max_err = float(jnp.max(jnp.abs(out - ref)))
    assert jnp.allclose(out, ref, atol=2e-3, rtol=1e-5), max_err

    print("KERNEL_OK")
</pallas_src>

<mosaic_0001>
module attributes {stable_mosaic.version = 11 : i64} {
  func.func @_bin_linear_kernel(%arg0: i32, %arg1: i32, %arg2: i32, %arg3: memref<24x1536xbf16, #tpu.memory_space<vmem>>, %arg4: memref<1536x256xi8, #tpu.memory_space<vmem>>, %arg5: memref<1x256xf32, #tpu.memory_space<vmem>>, %arg6: memref<24x256xf32, #tpu.memory_space<vmem>>) attributes {dimension_semantics = [#tpu.dimension_semantics<parallel>, #tpu.dimension_semantics<parallel>, #tpu.dimension_semantics<arbitrary>], iteration_bounds = array<i64: 1, 2, 2>, scalar_prefetch = 0 : i64, scratch_operands = 0 : i64, tpu.core_type = #tpu.core_type<tc>, window_params = [{transform_indices = @transform_0, window_bounds = array<i64: 24, 1536>}, {transform_indices = @transform_1, window_bounds = array<i64: 1536, 256>}, {transform_indices = @transform_2, window_bounds = array<i64: 1, 256>}, {transform_indices = @transform_3, window_bounds = array<i64: 24, 256>}]} {
    %c0_i32 = arith.constant 0 : i32
    %0 = arith.cmpi eq, %arg2, %c0_i32 : i32
    %1 = arith.extui %0 : i1 to i32
    %c0_i32_0 = arith.constant 0 : i32
    %2 = arith.cmpi ne, %1, %c0_i32_0 : i32
    scf.if %2 {
      %c0_12 = arith.constant 0 : index
      %c0_13 = arith.constant 0 : index
      %16 = vector.load %arg5[%c0_12, %c0_13] : memref<1x256xf32, #tpu.memory_space<vmem>>, vector<1x256xf32>
      %17 = vector.shape_cast %16 : vector<1x256xf32> to vector<1x256xf32>
      %18 = vector.broadcast %17 : vector<1x256xf32> to vector<24x256xf32>
      %c0_14 = arith.constant 0 : index
      %c0_15 = arith.constant 0 : index
      %19 = vector.load %arg6[%c0_14, %c0_15] : memref<24x256xf32, #tpu.memory_space<vmem>>, vector<24x256xf32>
      tpu.vector_store %arg6[%c0_14, %c0_15], %18 {strides = array<i32>} : memref<24x256xf32, #tpu.memory_space<vmem>>, vector<24x256xf32>,
    } else {
    }
    %c0 = arith.constant 0 : index
    %c0_1 = arith.constant 0 : index
    %3 = vector.load %arg3[%c0, %c0_1] : memref<24x1536xbf16, #tpu.memory_space<vmem>>, vector<24x1536xbf16>
    %cst = arith.constant 0.000000e+00 : bf16
    %4 = vector.broadcast %cst : bf16 to vector<24x1536xbf16>
    %5 = arith.cmpf ogt, %3, %4 : vector<24x1536xbf16>
    %cst_2 = arith.constant 0.000000e+00 : bf16
    %cst_3 = arith.constant 1.000000e+00 : bf16
    %6 = arith.subf %cst_2, %cst_3 : bf16
    %cst_4 = arith.constant 1.000000e+00 : bf16
    %7 = vector.broadcast %cst_4 : bf16 to vector<24x1536xbf16>
    %8 = vector.broadcast %6 : bf16 to vector<24x1536xbf16>
    %9 = arith.select %5, %7, %8 : vector<24x1536xi1>, vector<24x1536xbf16>
    %c0_5 = arith.constant 0 : index
    %c0_6 = arith.constant 0 : index
    %10 = vector.load %arg4[%c0_5, %c0_6] : memref<1536x256xi8, #tpu.memory_space<vmem>>, vector<1536x256xi8>
    %11 = arith.sitofp %10 : vector<1536x256xi8> to vector<1536x256xbf16>
    %c0_7 = arith.constant 0 : index
    %c0_8 = arith.constant 0 : index
    %12 = vector.load %arg6[%c0_7, %c0_8] : memref<24x256xf32, #tpu.memory_space<vmem>>, vector<24x256xf32>
    %cst_9 = arith.constant dense<0.000000e+00> : vector<24x256xf32>
    %13 = tpu.matmul %9, %11, %cst_9 {dimension_numbers = #tpu.dot_dimension_numbers<[1], [0], [0], [1], [0, 0, 1, 1], [], []>} : vector<24x1536xbf16>, vector<1536x256xbf16>, vector<24x256xf32> -> vector<24x256xf32>
    %14 = arith.addf %12, %13 : vector<24x256xf32>
    %c0_10 = arith.constant 0 : index
    %c0_11 = arith.constant 0 : index
    %15 = vector.load %arg6[%c0_10, %c0_11] : memref<24x256xf32, #tpu.memory_space<vmem>>, vector<24x256xf32>
    tpu.vector_store %arg6[%c0_10, %c0_11], %14 {strides = array<i32>} : memref<24x256xf32, #tpu.memory_space<vmem>>, vector<24x256xf32>,
    return
  }
  func.func @transform_0(%arg0: i32, %arg1: i32, %arg2: i32) -> (i32, i32) {
    %c0_i32 = arith.constant 0 : i32
    return %arg0, %arg2 : i32, i32
  }
  func.func @transform_1(%arg0: i32, %arg1: i32, %arg2: i32) -> (i32, i32) {
    %c0_i32 = arith.constant 0 : i32
    return %arg2, %arg1 : i32, i32
  }
  func.func @transform_2(%arg0: i32, %arg1: i32, %arg2: i32) -> (i32, i32) {
    %c0_i32 = arith.constant 0 : i32
    %c0_i32_0 = arith.constant 0 : i32
    return %c0_i32, %arg1 : i32, i32
  }
  func.func @transform_3(%arg0: i32, %arg1: i32, %arg2: i32) -> (i32, i32) {
    %c0_i32 = arith.constant 0 : i32
    return %arg0, %arg1 : i32, i32
  }
}

</mosaic_0001>

<llo_original>
// kernel: tpu_custom_call.1
$region0: #{tpu_custom_call.1}
  #allocation0 [shape = 'u32[]', space=smem, size = 0x4, offset = 0x4, fixed_abs, tag = 'smem constant byte address 0x4 - core index']
  #allocation1 [shape = 'u32[144,128]{1,0:T(1,128)}', space=vmem, size = 0x12000, scoped, tag = 'internal scratch']
  %s0 = inlined_call_operand.hbm [shape: bf16[24,3072], index: 0, kind: input, shape index: {}]
  %s1 = inlined_call_operand.hbm [shape: s8[3072,512], index: 1, kind: input, shape index: {}]
  %s2 = inlined_call_operand.hbm [shape: f32[1,512], index: 2, kind: input, shape index: {}]
  %s3 = inlined_call_operand.hbm [shape: f32[24,512], index: 3, kind: output, shape index: {}]
  %s4 = sld [smem:[#allocation0]]
  $region61: #{tpu_custom_call.1} parent=0
    _
  %s6 = ssub.s32 1, %s4
  %s7 = scalar_select 0, %s6, %s4
  $region1: #{tpu_custom_call.1} parent=0
    #allocation2 [shape = 'u8[147456]{0}', space=vmem, size = 0x24000, scoped, tag = 'input window, operand 0']
    #allocation3 [shape = 's32[2]{0}', space=sflag, size = 0x8, scoped, tag = 'scoped memory for tpu_custom_call.1']
    #allocation4 [shape = 's32[2]{0}', space=sflag, size = 0x8, scoped, tag = 'scoped memory for tpu_custom_call.1']
    #allocation5 [shape = 'u8[786432]{0}', space=vmem, size = 0xc0000, scoped, tag = 'input window, operand 1']
    #allocation6 [shape = 's32[2]{0}', space=sflag, size = 0x8, scoped, tag = 'scoped memory for tpu_custom_call.1']
    #allocation7 [shape = 'u8[2048]{0}', space=vmem, size = 0x800, scoped, tag = 'input window, operand 2']
    #allocation8 [shape = 'u8[49152]{0}', space=vmem, size = 0xc000, scoped, tag = 'output window, operand 0']
    %8 = vsyncpa [#allocation3], 0
    %s9 = scalar_lea.sflag [#allocation3], 1
    %10 = vsyncpa %s9, 0
    %11 = vsyncpa [#allocation6], 0
    %s12 = scalar_lea.sflag [#allocation6], 1
    %13 = vsyncpa %s12, 0
    %14 = vsyncpa [#allocation4], 0
    %s15 = scalar_lea.sflag [#allocation4], 1
    %16 = vsyncpa %s15, 0
    loop: start=0, step=1, limit=6
    $region2: #{tpu_custom_call.1} parent=1 // loop_pre_header
      _
    $region3: #{tpu_custom_call.1} parent=1 // loop_header
      %s18 = sphi 0, %s22
      %p19 = scmp.ge.s32.totalorder %s18, 6
      %s25 = sphi 0, %s44
      %s26 = sphi 0, %s40
      %s27 = sphi 0, %s36
      %s28 = sphi 0, %s25
      %s29 = sphi 0, %s26
      %s30 = sphi 0, %s27
      %s31 = sphi 0, %s28
      %s32 = sphi 0, %s29
      %s33 = sphi 0, %s30
      %s49 = sphi 0, %s51
      %s52 = sphi 0, %s49
      %s53 = sphi 0, %s52
      %s69 = sphi 0, %s53
      %s77 = sphi 0, %s79
      %s80 = sphi 0, %s77
      %s81 = sphi 0, %s80
      %s97 = sphi 0, %s81
      %s103 = sphi 0, %s105
      %s106 = sphi 0, %s103
      %s107 = sphi 0, %s106
      %s123 = sphi 0, %s107
      %s131 = sphi 0, %s133
      %s134 = sphi 0, %s131
      %s135 = sphi 0, %s134
      %s151 = sphi 0, %s135
    $region4: #{tpu_custom_call.1} parent=1 // loop_header_branch
      %21 = sbr.rel (%p19) target = $region8
    $region5: #{tpu_custom_call.1} parent=1 // loop_body
      %s23 = ssub.s32 %s18, 1
      %s24 = ssub.s32 %s18, 2
      %s34 = sadd.s32 1, %s27
      %p35 = scmp.ge.s32.totalorder %s34, 2
      %s36 = scalar_select %p35, 0, %s34
      %s37 = sadd.s32 1, %s26
      %s38 = scalar_select %p35, %s37, %s26
      %p39 = scmp.ge.s32.totalorder %s38, 2
      %s40 = scalar_select %p39, 0, %s38
      %s41 = sadd.s32 1, %s25
      %s42 = scalar_select %p39, %s41, %s25
      %p43 = scmp.ge.s32.totalorder %s42, 1
      %s44 = scalar_select %p43, 0, %s42
      %s45 = ssub.s32 %s25, %s44
      %s46 = ssub.s32 %s27, %s36
      %s47 = sor.u32 %s45, %s46
      %p48 = scmp.eq.s32.totalorder %s47, 0
      %s50 = sadd.s32 %s49, 1
      %s51 = scalar_select %p48, %s49, %s50
      %p54 = pneg %p48
      %p55 = scmp.eq.s32.totalorder %s18, 3
      %p56 = por %p54, %p55
      %p57 = scmp.ne.s32.totalorder %s49, %s52
      %p58 = scmp.eq.s32.totalorder %s18, 0
      %p59 = por %p57, %p58
      %p60 = scmp.ne.s32.totalorder %s49, %s52
      %p61 = scmp.eq.s32.totalorder %s23, 3
      %p62 = por %p60, %p61
      %p63 = scmp.ne.s32.totalorder %s52, %s53
      %p64 = scmp.eq.s32.totalorder %s23, 0
      %p65 = por %p63, %p64
      %p66 = scmp.ne.s32.totalorder %s52, %s53
      %p67 = scmp.eq.s32.totalorder %s24, 3
      %p68 = por %p66, %p67
      %p70 = scmp.ne.s32.totalorder %s53, %s69
      %p71 = scmp.eq.s32.totalorder %s24, 0
      %p72 = por %p70, %p71
      %s73 = ssub.s32 %s27, %s36
      %s74 = ssub.s32 %s26, %s40
      %s75 = sor.u32 %s73, %s74
      %p76 = scmp.eq.s32.totalorder %s75, 0
      %s78 = sadd.s32 %s77, 1
      %s79 = scalar_select %p76, %s77, %s78
      %p82 = pneg %p76
      %p83 = scmp.eq.s32.totalorder %s18, 3
      %p84 = por %p82, %p83
      %p85 = scmp.ne.s32.totalorder %s77, %s80
      %p86 = scmp.eq.s32.totalorder %s18, 0
      %p87 = por %p85, %p86
      %p88 = scmp.ne.s32.totalorder %s77, %s80
      %p89 = scmp.eq.s32.totalorder %s23, 3
      %p90 = por %p88, %p89
      %p91 = scmp.ne.s32.totalorder %s80, %s81
      %p92 = scmp.eq.s32.totalorder %s23, 0
      %p93 = por %p91, %p92
      %p94 = scmp.ne.s32.totalorder %s80, %s81
      %p95 = scmp.eq.s32.totalorder %s24, 3
      %p96 = por %p94, %p95
      %p98 = scmp.ne.s32.totalorder %s81, %s97
      %p99 = scmp.eq.s32.totalorder %s24, 0
      %p100 = por %p98, %p99
      %s101 = ssub.s32 %s26, %s40
      %p102 = scmp.eq.s32.totalorder %s101, 0
      %s104 = sadd.s32 %s103, 1
      %s105 = scalar_select %p102, %s103, %s104
      %p108 = pneg %p102
      %p109 = scmp.eq.s32.totalorder %s18, 3
      %p110 = por %p108, %p109
      %p111 = scmp.ne.s32.totalorder %s103, %s106
      %p112 = scmp.eq.s32.totalorder %s18, 0
      %p113 = por %p111, %p112
      %p114 = scmp.ne.s32.totalorder %s103, %s106
      %p115 = scmp.eq.s32.totalorder %s23, 3
      %p116 = por %p114, %p115
      %p117 = scmp.ne.s32.totalorder %s106, %s107
      %p118 = scmp.eq.s32.totalorder %s23, 0
      %p119 = por %p117, %p118
      %p120 = scmp.ne.s32.totalorder %s106, %s107
      %p121 = scmp.eq.s32.totalorder %s24, 3
      %p122 = por %p120, %p121
      %p124 = scmp.ne.s32.totalorder %s107, %s123
      %p125 = scmp.eq.s32.totalorder %s24, 0
      %p126 = por %p124, %p125
      %s127 = ssub.s32 %s25, %s44
      %s128 = ssub.s32 %s26, %s40
      %s129 = sor.u32 %s127, %s128
      %p130 = scmp.eq.s32.totalorder %s129, 0
      %s132 = sadd.s32 %s131, 1
      %s133 = scalar_select %p130, %s131, %s132
      %p136 = pneg %p130
      %p137 = scmp.eq.s32.totalorder %s18, 3
      %p138 = por %p136, %p137
      %p139 = scmp.ne.s32.totalorder %s131, %s134
      %p140 = scmp.eq.s32.totalorder %s18, 0
      %p141 = por %p139, %p140
      %p142 = scmp.ne.s32.totalorder %s131, %s134
      %p143 = scmp.eq.s32.totalorder %s23, 3
      %p144 = por %p142, %p143
      %p145 = scmp.ne.s32.totalorder %s134, %s135
      %p146 = scmp.eq.s32.totalorder %s23, 0
      %p147 = por %p145, %p146
      %p148 = scmp.ne.s32.totalorder %s134, %s135
      %p149 = scmp.eq.s32.totalorder %s24, 3
      %p150 = por %p148, %p149
      %p152 = scmp.ne.s32.totalorder %s135, %s151
      %p153 = scmp.eq.s32.totalorder %s24, 0
      %p154 = por %p152, %p153
      %p155 = scmp.le.s32.totalorder 1, %s18
      %p156 = scmp.lt.s32.totalorder %s18, 5
      %p157 = pnand %p155, %p156
      %p158 = pneg %p157
      // Predicated region
      $region9: #{tpu_custom_call.1} parent=5 // pred_check
        _
      $region10: #{tpu_custom_call.1} parent=5 // pred_check_branch
        %160 = sbr.rel (%p157) target = $region12
      $region11: #{tpu_custom_call.1} parent=5 // pred_region
        %s161 = ssub.s32 %s18, 1
      $region12: #{tpu_custom_call.1} parent=5 // pred_fallthru
        _
      %p162 = scmp.lt.s32.totalorder %s18, 4
      // Predicated region
      $region13: #{tpu_custom_call.1} parent=5 // pred_check
        %p163 = pneg %p162
      $region14: #{tpu_custom_call.1} parent=5 // pred_check_branch
        %165 = sbr.rel (%p163) target = $region16
      $region15: #{tpu_custom_call.1} parent=5 // pred_region
        // Predicated region
        $region17: #{tpu_custom_call.1} parent=15 // pred_check
          %p166 = pneg %p59
        $region18: #{tpu_custom_call.1} parent=15 // pred_check_branch
          %168 = sbr.rel (%p166) target = $region20
        $region19: #{tpu_custom_call.1} parent=15 // pred_region
          %s169 = sand.u32 %s49, 1
          %s170 = scalar_lea.sflag [#allocation3], %s169
          %s171 = sand.u32 %s49, 1
          %s172 = smul.addr %s171, 144
          %s173 = scalar_lea.vmem [#allocation2], %s172
          %s174 = smul.u32 3, %s25
          %s175 = smul.u32 12, %s27
          %s177 = ssub.s32 2304, 2304
          %178 = vsyncadd %s170, %s177
          %s179 = smul.addr %s174, 24
          %s180 = sadd.s32 %s175, %s179
          %s181 = smul.addr %s180, 64
          %s182 = scalar_lea.hbm %s0, %s181
          %s183 = sshll.u32 %s173, 4
          %s184 = int_to_ptr.vmem [resolvable:$true] %s183
          %189 = dma.hbm_to_vmem [thread:$0]  %s182, 2304, %s184, %s170, 1536, 768, 48
        $region20: #{tpu_custom_call.1} parent=15 // pred_fallthru
          _
        // Predicated region
        $region21: #{tpu_custom_call.1} parent=15 // pred_check
          %p190 = pneg %p87
        $region22: #{tpu_custom_call.1} parent=15 // pred_check_branch
          %192 = sbr.rel (%p190) target = $region24
        $region23: #{tpu_custom_call.1} parent=15 // pred_region
          %s193 = sand.u32 %s18, 1
          %s194 = scalar_lea.sflag [#allocation6], %s193
          %s195 = sand.u32 %s77, 1
          %s196 = smul.addr %s195, 768
          %s197 = scalar_lea.vmem [#allocation5], %s196
          %s198 = smul.u32 48, %s27
          %s199 = smul.u32 2, %s26
          %s201 = ssub.s32 12288, 12288
          %202 = vsyncadd %s194, %s201
          %s203 = smul.addr %s198, 4
          %s204 = sadd.s32 %s199, %s203
          %s205 = smul.addr %s204, 128
          %s206 = scalar_lea.hbm %s1, %s205
          %s207 = sshll.u32 %s197, 4
          %s208 = int_to_ptr.vmem [resolvable:$true] %s207
          %213 = dma.hbm_to_vmem [thread:$0]  %s206, 12288, %s208, %s194, 512, 256, 16
        $region24: #{tpu_custom_call.1} parent=15 // pred_fallthru
          _
        // Predicated region
        $region25: #{tpu_custom_call.1} parent=15 // pred_check
          %p214 = pneg %p113
        $region26: #{tpu_custom_call.1} parent=15 // pred_check_branch
          %216 = sbr.rel (%p214) target = $region28
        $region27: #{tpu_custom_call.1} parent=15 // pred_region
          %s217 = sand.u32 %s18, 1
          %s218 = scalar_lea.sflag [#allocation6], %s217
          %s219 = sand.u32 %s103, 1
          %s220 = smul.addr %s219, 2
          %s221 = scalar_lea.vmem [#allocation7], %s220
          %s222 = smul.u32 2, %s26
          %s224 = ssub.s32 32, 32
          %225 = vsyncadd %s218, %s224
          %s226 = smul.addr %s222, 16
          %s227 = scalar_lea.hbm %s2, %s226
          %s229 = sshll.u32 %s221, 4
          %s230 = int_to_ptr.vmem [resolvable:$true] %s229
          %232 = dma.hbm_to_vmem [thread:$0]  %s227, 32, %s230, %s218
        $region28: #{tpu_custom_call.1} parent=15 // pred_fallthru
          _
      $region16: #{tpu_custom_call.1} parent=5 // pred_fallthru
        _
      %p233 = scmp.le.s32.totalorder 1, %s18
      %p234 = scmp.lt.s32.totalorder %s18, 5
      %p235 = pnand %p233, %p234
      %p236 = pneg %p235
      // Predicated region
      $region29: #{tpu_custom_call.1} parent=5 // pred_check
        _
      $region30: #{tpu_custom_call.1} parent=5 // pred_check_branch
        %238 = sbr.rel (%p235) target = $region32
      $region31: #{tpu_custom_call.1} parent=5 // pred_region
        %s239 = ssub.s32 %s18, 1
        %s240 = sand.u32 %s52, 1
        %s241 = scalar_lea.sflag [#allocation3], %s240
        %s242 = sand.u32 %s52, 1
        %s243 = smul.addr %s242, 144
        %s244 = scalar_lea.vmem [#allocation2], %s243
        // Predicated region
        $region33: #{tpu_custom_call.1} parent=31 // pred_check
          %p245 = pneg %p65
        $region34: #{tpu_custom_call.1} parent=31 // pred_check_branch
          %247 = sbr.rel (%p245) target = $region36
        $region35: #{tpu_custom_call.1} parent=31 // pred_region
          %248 = dma.done %s241, 2304
        $region36: #{tpu_custom_call.1} parent=31 // pred_fallthru
          _
        %s249 = sand.u32 %s23, 1
        %s250 = scalar_lea.sflag [#allocation6], %s249
        %s251 = sand.u32 %s80, 1
        %s252 = smul.addr %s251, 768
        %s253 = scalar_lea.vmem [#allocation5], %s252
        // Predicated region
        $region37: #{tpu_custom_call.1} parent=31 // pred_check
          %p254 = pneg %p93
        $region38: #{tpu_custom_call.1} parent=31 // pred_check_branch
          %256 = sbr.rel (%p254) target = $region40
        $region39: #{tpu_custom_call.1} parent=31 // pred_region
          %257 = dma.done %s250, 12288
        $region40: #{tpu_custom_call.1} parent=31 // pred_fallthru
          _
        %s258 = sand.u32 %s23, 1
        %s259 = scalar_lea.sflag [#allocation6], %s258
        %s260 = sand.u32 %s106, 1
        %s261 = smul.addr %s260, 2
        %s262 = scalar_lea.vmem [#allocation7], %s261
        // Predicated region
        $region41: #{tpu_custom_call.1} parent=31 // pred_check
          %p263 = pneg %p119
        $region42: #{tpu_custom_call.1} parent=31 // pred_check_branch
          %265 = sbr.rel (%p263) target = $region44
        $region43: #{tpu_custom_call.1} parent=31 // pred_region
          %266 = dma.done %s259, 32
        $region44: #{tpu_custom_call.1} parent=31 // pred_fallthru
          _
        %s267 = sand.u32 %s52, 1
        %s268 = scalar_lea.sflag [#allocation3], %s267
        %s269 = sand.u32 %s52, 1
        %s270 = smul.addr %s269, 144
        %s271 = scalar_lea.vmem [#allocation2], %s270
        %p272 = pneg %p65
        %p273 = pneg %p62
        %s274 = sand.u32 %s23, 1
        %s275 = scalar_lea.sflag [#allocation6], %s274
        %s276 = sand.u32 %s80, 1
        %s277 = smul.addr %s276, 768
        %s278 = scalar_lea.vmem [#allocation5], %s277
        %p279 = pneg %p93
        %p280 = pneg %p90
        %s281 = sand.u32 %s23, 1
        %s282 = scalar_lea.sflag [#allocation6], %s281
        %s283 = sand.u32 %s106, 1
        %s284 = smul.addr %s283, 2
        %s285 = scalar_lea.vmem [#allocation7], %s284
        %p286 = pneg %p119
        %p287 = pneg %p116
        %p288 = pneg %p147
        %p289 = pneg %p144
        %s290 = sand.u32 %s134, 1
        %s291 = scalar_lea.sflag [#allocation4], %s290
        %s292 = sand.u32 %s134, 1
        %s293 = smul.addr %s292, 48
        %s294 = scalar_lea.vmem [#allocation8], %s293
        %s295 = smul.u32 3, %s28
        %s296 = smul.u32 12, %s30
        %s297 = smul.u32 48, %s30
        %s298 = smul.u32 2, %s29
        %s299 = smul.u32 2, %s29
        %s300 = smul.u32 3, %s28
        %s301 = smul.u32 2, %s29
        %p305 = scmp.eq.s32.totalorder %s30, 0
        // Predicated region
        $region45: #{tpu_custom_call.1} parent=31 // pred_check
          %p306 = pneg %p305
        $region46: #{tpu_custom_call.1} parent=31 // pred_check_branch
          %308 = sbr.rel (%p306) target = $region48
        $region47: #{tpu_custom_call.1} parent=31 // pred_region
          %v309 = vld [vmem:[%s262] sm:$0x3]
          %v311 = vlaneseq
          %v312 = vshrl.u32 %v311, 7
          %v313 = vsub.s32 0, %v312
          %v314 = vrot.slane %v309, %v313
          %v315 = vlaneseq
          %v316 = vshrl.u32 %v315, 7
          %v317 = vsub.s32 1, %v316
          %v318 = vrot.slane %v309, %v317
          %321 = vst [vmem:[%s294] sm:$0xff] %v314
          %322 = vst [vmem:[%s294 + $0x8] sm:$0xff] %v318
          %323 = vst [vmem:[%s294 + $0x10] sm:$0xff] %v314
          %324 = vst [vmem:[%s294 + $0x18] sm:$0xff] %v318
          %325 = vst [vmem:[%s294 + $0x20] sm:$0xff] %v314
          %326 = vst [vmem:[%s294 + $0x28] sm:$0xff] %v318
        $region48: #{tpu_custom_call.1} parent=31 // pred_fallthru
          _
        %v327 = vld [vmem:[%s244] sm:$0xff]
        %v328 = vld [vmem:[%s244 + $0x8] sm:$0xff]
        %v329 = vld [vmem:[%s244 + $0x10] sm:$0xff]
        %v330 = vld [vmem:[%s244 + $0x18] sm:$0xff]
        %v331 = vld [vmem:[%s244 + $0x20] sm:$0xff]
        %v332 = vld [vmem:[%s244 + $0x28] sm:$0xff]
        %v333 = vld [vmem:[%s244 + $0x30] sm:$0xff]
        %v334 = vld [vmem:[%s244 + $0x38] sm:$0xff]
        %v335 = vld [vmem:[%s244 + $0x40] sm:$0xff]
        %v336 = vld [vmem:[%s244 + $0x48] sm:$0xff]
        %v337 = vld [vmem:[%s244 + $0x50] sm:$0xff]
        %v338 = vld [vmem:[%s244 + $0x58] sm:$0xff]
        %v339 = vld [vmem:[%s244 + $0x60] sm:$0xff]
        %v340 = vld [vmem:[%s244 + $0x68] sm:$0xff]
        %v341 = vld [vmem:[%s244 + $0x70] sm:$0xff]
        %v342 = vld [vmem:[%s244 + $0x78] sm:$0xff]
        %v343 = vld [vmem:[%s244 + $0x80] sm:$0xff]
        %v344 = vld [vmem:[%s244 + $0x88] sm:$0xff]
        %vm345 = vcmp.gt.bf16.partialorder %v327, 0
        %vm346 = vcmp.gt.bf16.partialorder %v328, 0
        %vm347 = vcmp.gt.bf16.partialorder %v329, 0
        %vm348 = vcmp.gt.bf16.partialorder %v330, 0
        %vm349 = vcmp.gt.bf16.partialorder %v331, 0
        %vm350 = vcmp.gt.bf16.partialorder %v332, 0
        %vm351 = vcmp.gt.bf16.partialorder %v333, 0
        %vm352 = vcmp.gt.bf16.partialorder %v334, 0
        %vm353 = vcmp.gt.bf16.partialorder %v335, 0
        %vm354 = vcmp.gt.bf16.partialorder %v336, 0
        %vm355 = vcmp.gt.bf16.partialorder %v337, 0
        %vm356 = vcmp.gt.bf16.partialorder %v338, 0
        %vm357 = vcmp.gt.bf16.partialorder %v339, 0
        %vm358 = vcmp.gt.bf16.partialorder %v340, 0
        %vm359 = vcmp.gt.bf16.partialorder %v341, 0
        %vm360 = vcmp.gt.bf16.partialorder %v342, 0
        %vm361 = vcmp.gt.bf16.partialorder %v343, 0
        %vm362 = vcmp.gt.bf16.partialorder %v344, 0
        %v363 = vsel %vm345, 1065369472, 3212885888
        %v364 = vsel %vm346, 1065369472, 3212885888
        %v365 = vsel %vm347, 1065369472, 3212885888
        %v366 = vsel %vm348, 1065369472, 3212885888
        %v367 = vsel %vm349, 1065369472, 3212885888
        %v368 = vsel %vm350, 1065369472, 3212885888
        %v369 = vsel %vm351, 1065369472, 3212885888
        %v370 = vsel %vm352, 1065369472, 3212885888
        %v371 = vsel %vm353, 1065369472, 3212885888
        %v372 = vsel %vm354, 1065369472, 3212885888
        %v373 = vsel %vm355, 1065369472, 3212885888
        %v374 = vsel %vm356, 1065369472, 3212885888
        %v375 = vsel %vm357, 1065369472, 3212885888
        %v376 = vsel %vm358, 1065369472, 3212885888
        %v377 = vsel %vm359, 1065369472, 3212885888
        %v378 = vsel %vm360, 1065369472, 3212885888
        %v379 = vsel %vm361, 1065369472, 3212885888
        %v380 = vsel %vm362, 1065369472, 3212885888
        %v381 = vld [vmem:[%s253] sm:$0xff]
        %v382 = vld [vmem:[%s253 + $0x8] sm:$0xff]
        %v383 = vld [vmem:[%s253 + $0x10] sm:$0xff]
        %v384 = vld [vmem:[%s253 + $0x18] sm:$0xff]
        %v385 = vld [vmem:[%s253 + $0x20] sm:$0xff]
        %v386 = vld [vmem:[%s253 + $0x28] sm:$0xff]
        %v387 = vld [vmem:[%s253 + $0x30] sm:$0xff]
        %v388 = vld [vmem:[%s253 + $0x38] sm:$0xff]
        %v389 = vld [vmem:[%s253 + $0x40] sm:$0xff]
        %v390 = vld [vmem:[%s253 + $0x48] sm:$0xff]
        %v391 = vld [vmem:[%s253 + $0x50] sm:$0xff]
        %v392 = vld [vmem:[%s253 + $0x58] sm:$0xff]
        %v393 = vld [vmem:[%s253 + $0x60] sm:$0xff]
        %v394 = vld [vmem:[%s253 + $0x68] sm:$0xff]
        %v395 = vld [vmem:[%s253 + $0x70] sm:$0xff]
        %v396 = vld [vmem:[%s253 + $0x78] sm:$0xff]
        %v397 = vld [vmem:[%s253 + $0x80] sm:$0xff]
        %v398 = vld [vmem:[%s253 + $0x88] sm:$0xff]
        %v399 = vld [vmem:[%s253 + $0x90] sm:$0xff]
        %v400 = vld [vmem:[%s253 + $0x98] sm:$0xff]
        %v401 = vld [vmem:[%s253 + $0xa0] sm:$0xff]
        %v402 = vld [vmem:[%s253 + $0xa8] sm:$0xff]
        %v403 = vld [vmem:[%s253 + $0xb0] sm:$0xff]
        %v404 = vld [vmem:[%s253 + $0xb8] sm:$0xff]
        %v405 = vld [vmem:[%s253 + $0xc0] sm:$0xff]
        %v406 = vld [vmem:[%s253 + $0xc8] sm:$0xff]
        %v407 = vld [vmem:[%s253 + $0xd0] sm:$0xff]
        %v408 = vld [vmem:[%s253 + $0xd8] sm:$0xff]
        %v409 = vld [vmem:[%s253 + $0xe0] sm:$0xff]
        %v410 = vld [vmem:[%s253 + $0xe8] sm:$0xff]
        %v411 = vld [vmem:[%s253 + $0xf0] sm:$0xff]
        %v412 = vld [vmem:[%s253 + $0xf8] sm:$0xff]
        %v413 = vld [vmem:[%s253 + $0x100] sm:$0xff]
        %v414 = vld [vmem:[%s253 + $0x108] sm:$0xff]
        %v415 = vld [vmem:[%s253 + $0x110] sm:$0xff]
        %v416 = vld [vmem:[%s253 + $0x118] sm:$0xff]
        %v417 = vld [vmem:[%s253 + $0x120] sm:$0xff]
        %v418 = vld [vmem:[%s253 + $0x128] sm:$0xff]
        %v419 = vld [vmem:[%s253 + $0x130] sm:$0xff]
        %v420 = vld [vmem:[%s253 + $0x138] sm:$0xff]
        %v421 = vld [vmem:[%s253 + $0x140] sm:$0xff]
        %v422 = vld [vmem:[%s253 + $0x148] sm:$0xff]
        %v423 = vld [vmem:[%s253 + $0x150] sm:$0xff]
        %v424 = vld [vmem:[%s253 + $0x158] sm:$0xff]
        %v425 = vld [vmem:[%s253 + $0x160] sm:$0xff]
        %v426 = vld [vmem:[%s253 + $0x168] sm:$0xff]
        %v427 = vld [vmem:[%s253 + $0x170] sm:$0xff]
        %v428 = vld [vmem:[%s253 + $0x178] sm:$0xff]
        %v429 = vld [vmem:[%s253 + $0x180] sm:$0xff]
        %v430 = vld [vmem:[%s253 + $0x188] sm:$0xff]
        %v431 = vld [vmem:[%s253 + $0x190] sm:$0xff]
        %v432 = vld [vmem:[%s253 + $0x198] sm:$0xff]
        %v433 = vld [vmem:[%s253 + $0x1a0] sm:$0xff]
        %v434 = vld [vmem:[%s253 + $0x1a8] sm:$0xff]
        %v435 = vld [vmem:[%s253 + $0x1b0] sm:$0xff]
        %v436 = vld [vmem:[%s253 + $0x1b8] sm:$0xff]
        %v437 = vld [vmem:[%s253 + $0x1c0] sm:$0xff]
        %v438 = vld [vmem:[%s253 + $0x1c8] sm:$0xff]
        %v439 = vld [vmem:[%s253 + $0x1d0] sm:$0xff]
        %v440 = vld [vmem:[%s253 + $0x1d8] sm:$0xff]
        %v441 = vld [vmem:[%s253 + $0x1e0] sm:$0xff]
        %v442 = vld [vmem:[%s253 + $0x1e8] sm:$0xff]
        %v443 = vld [vmem:[%s253 + $0x1f0] sm:$0xff]
        %v444 = vld [vmem:[%s253 + $0x1f8] sm:$0xff]
        %v445 = vld [vmem:[%s253 + $0x200] sm:$0xff]
        %v446 = vld [vmem:[%s253 + $0x208] sm:$0xff]
        %v447 = vld [vmem:[%s253 + $0x210] sm:$0xff]
        %v448 = vld [vmem:[%s253 + $0x218] sm:$0xff]
        %v449 = vld [vmem:[%s253 + $0x220] sm:$0xff]
        %v450 = vld [vmem:[%s253 + $0x228] sm:$0xff]
        %v451 = vld [vmem:[%s253 + $0x230] sm:$0xff]
        %v452 = vld [vmem:[%s253 + $0x238] sm:$0xff]
        %v453 = vld [vmem:[%s253 + $0x240] sm:$0xff]
        %v454 = vld [vmem:[%s253 + $0x248] sm:$0xff]
        %v455 = vld [vmem:[%s253 + $0x250] sm:$0xff]
        %v456 = vld [vmem:[%s253 + $0x258] sm:$0xff]
        %v457 = vld [vmem:[%s253 + $0x260] sm:$0xff]
        %v458 = vld [vmem:[%s253 + $0x268] sm:$0xff]
        %v459 = vld [vmem:[%s253 + $0x270] sm:$0xff]
        %v460 = vld [vmem:[%s253 + $0x278] sm:$0xff]
        %v461 = vld [vmem:[%s253 + $0x280] sm:$0xff]
        %v462 = vld [vmem:[%s253 + $0x288] sm:$0xff]
        %v463 = vld [vmem:[%s253 + $0x290] sm:$0xff]
        %v464 = vld [vmem:[%s253 + $0x298] sm:$0xff]
        %v465 = vld [vmem:[%s253 + $0x2a0] sm:$0xff]
        %v466 = vld [vmem:[%s253 + $0x2a8] sm:$0xff]
        %v467 = vld [vmem:[%s253 + $0x2b0] sm:$0xff]
        %v468 = vld [vmem:[%s253 + $0x2b8] sm:$0xff]
        %v469 = vld [vmem:[%s253 + $0x2c0] sm:$0xff]
        %v470 = vld [vmem:[%s253 + $0x2c8] sm:$0xff]
        %v471 = vld [vmem:[%s253 + $0x2d0] sm:$0xff]
        %v472 = vld [vmem:[%s253 + $0x2d8] sm:$0xff]
        %v473 = vld [vmem:[%s253 + $0x2e0] sm:$0xff]
        %v474 = vld [vmem:[%s253 + $0x2e8] sm:$0xff]
        %v475 = vld [vmem:[%s253 + $0x2f0] sm:$0xff]
        %v476 = vld [vmem:[%s253 + $0x2f8] sm:$0xff]
        %v477 = vunpack.c.l.s8.bf16 %v381
        %v478 = vunpack.c.l.s8.bf16 %v382
        %v479 = vunpack.c.h.s8.bf16 %v381
        %v480 = vunpack.c.h.s8.bf16 %v382
        %v481 = vunpack.c.l.s8.bf16 %v383
        %v482 = vunpack.c.l.s8.bf16 %v384
        %v483 = vunpack.c.h.s8.bf16 %v383
        %v484 = vunpack.c.h.s8.bf16 %v384
        %v485 = vunpack.c.l.s8.bf16 %v385
        %v486 = vunpack.c.l.s8.bf16 %v386
        %v487 = vunpack.c.h.s8.bf16 %v385
        %v488 = vunpack.c.h.s8.bf16 %v386
        %v489 = vunpack.c.l.s8.bf16 %v387
        %v490 = vunpack.c.l.s8.bf16 %v388
        %v491 = vunpack.c.h.s8.bf16 %v387
        %v492 = vunpack.c.h.s8.bf16 %v388
        %v493 = vunpack.c.l.s8.bf16 %v389
        %v494 = vunpack.c.l.s8.bf16 %v390
        %v495 = vunpack.c.h.s8.bf16 %v389
        %v496 = vunpack.c.h.s8.bf16 %v390
        %v497 = vunpack.c.l.s8.bf16 %v391
        %v498 = vunpack.c.l.s8.bf16 %v392
        %v499 = vunpack.c.h.s8.bf16 %v391
        %v500 = vunpack.c.h.s8.bf16 %v392
        %v501 = vunpack.c.l.s8.bf16 %v393
        %v502 = vunpack.c.l.s8.bf16 %v394
        %v503 = vunpack.c.h.s8.bf16 %v393
        %v504 = vunpack.c.h.s8.bf16 %v394
        %v505 = vunpack.c.l.s8.bf16 %v395
        %v506 = vunpack.c.l.s8.bf16 %v396
        %v507 = vunpack.c.h.s8.bf16 %v395
        %v508 = vunpack.c.h.s8.bf16 %v396
        %v509 = vunpack.c.l.s8.bf16 %v397
        %v510 = vunpack.c.l.s8.bf16 %v398
        %v511 = vunpack.c.h.s8.bf16 %v397
        %v512 = vunpack.c.h.s8.bf16 %v398
        %v513 = vunpack.c.l.s8.bf16 %v399
        %v514 = vunpack.c.l.s8.bf16 %v400
        %v515 = vunpack.c.h.s8.bf16 %v399
        %v516 = vunpack.c.h.s8.bf16 %v400
        %v517 = vunpack.c.l.s8.bf16 %v401
        %v518 = vunpack.c.l.s8.bf16 %v402
        %v519 = vunpack.c.h.s8.bf16 %v401
        %v520 = vunpack.c.h.s8.bf16 %v402
        %v521 = vunpack.c.l.s8.bf16 %v403
        %v522 = vunpack.c.l.s8.bf16 %v404
        %v523 = vunpack.c.h.s8.bf16 %v403
        %v524 = vunpack.c.h.s8.bf16 %v404
        %v525 = vunpack.c.l.s8.bf16 %v405
        %v526 = vunpack.c.l.s8.bf16 %v406
        %v527 = vunpack.c.h.s8.bf16 %v405
        %v528 = vunpack.c.h.s8.bf16 %v406
        %v529 = vunpack.c.l.s8.bf16 %v407
        %v530 = vunpack.c.l.s8.bf16 %v408
        %v531 = vunpack.c.h.s8.bf16 %v407
        %v532 = vunpack.c.h.s8.bf16 %v408
        %v533 = vunpack.c.l.s8.bf16 %v409
        %v534 = vunpack.c.l.s8.bf16 %v410
        %v535 = vunpack.c.h.s8.bf16 %v409
        %v536 = vunpack.c.h.s8.bf16 %v410
        %v537 = vunpack.c.l.s8.bf16 %v411
        %v538 = vunpack.c.l.s8.bf16 %v412
        %v539 = vunpack.c.h.s8.bf16 %v411
        %v540 = vunpack.c.h.s8.bf16 %v412
        %v541 = vunpack.c.l.s8.bf16 %v413
        %v542 = vunpack.c.l.s8.bf16 %v414
        %v543 = vunpack.c.h.s8.bf16 %v413
        %v544 = vunpack.c.h.s8.bf16 %v414
        %v545 = vunpack.c.l.s8.bf16 %v415
        %v546 = vunpack.c.l.s8.bf16 %v416
        %v547 = vunpack.c.h.s8.bf16 %v415
        %v548 = vunpack.c.h.s8.bf16 %v416
        %v549 = vunpack.c.l.s8.bf16 %v417
        %v550 = vunpack.c.l.s8.bf16 %v418
        %v551 = vunpack.c.h.s8.bf16 %v417
        %v552 = vunpack.c.h.s8.bf16 %v418
        %v553 = vunpack.c.l.s8.bf16 %v419
        %v554 = vunpack.c.l.s8.bf16 %v420
        %v555 = vunpack.c.h.s8.bf16 %v419
        %v556 = vunpack.c.h.s8.bf16 %v420
        %v557 = vunpack.c.l.s8.bf16 %v421
        %v558 = vunpack.c.l.s8.bf16 %v422
        %v559 = vunpack.c.h.s8.bf16 %v421
        %v560 = vunpack.c.h.s8.bf16 %v422
        %v561 = vunpack.c.l.s8.bf16 %v423
        %v562 = vunpack.c.l.s8.bf16 %v424
        %v563 = vunpack.c.h.s8.bf16 %v423
        %v564 = vunpack.c.h.s8.bf16 %v424
        %v565 = vunpack.c.l.s8.bf16 %v425
        %v566 = vunpack.c.l.s8.bf16 %v426
        %v567 = vunpack.c.h.s8.bf16 %v425
        %v568 = vunpack.c.h.s8.bf16 %v426
        %v569 = vunpack.c.l.s8.bf16 %v427
        %v570 = vunpack.c.l.s8.bf16 %v428
        %v571 = vunpack.c.h.s8.bf16 %v427
        %v572 = vunpack.c.h.s8.bf16 %v428
        %v573 = vunpack.c.l.s8.bf16 %v429
        %v574 = vunpack.c.l.s8.bf16 %v430
        %v575 = vunpack.c.h.s8.bf16 %v429
        %v576 = vunpack.c.h.s8.bf16 %v430
        %v577 = vunpack.c.l.s8.bf16 %v431
        %v578 = vunpack.c.l.s8.bf16 %v432
        %v579 = vunpack.c.h.s8.bf16 %v431
        %v580 = vunpack.c.h.s8.bf16 %v432
        %v581 = vunpack.c.l.s8.bf16 %v433
        %v582 = vunpack.c.l.s8.bf16 %v434
        %v583 = vunpack.c.h.s8.bf16 %v433
        %v584 = vunpack.c.h.s8.bf16 %v434
        %v585 = vunpack.c.l.s8.bf16 %v435
        %v586 = vunpack.c.l.s8.bf16 %v436
        %v587 = vunpack.c.h.s8.bf16 %v435
        %v588 = vunpack.c.h.s8.bf16 %v436
        %v589 = vunpack.c.l.s8.bf16 %v437
        %v590 = vunpack.c.l.s8.bf16 %v438
        %v591 = vunpack.c.h.s8.bf16 %v437
        %v592 = vunpack.c.h.s8.bf16 %v438
        %v593 = vunpack.c.l.s8.bf16 %v439
        %v594 = vunpack.c.l.s8.bf16 %v440
        %v595 = vunpack.c.h.s8.bf16 %v439
        %v596 = vunpack.c.h.s8.bf16 %v440
        %v597 = vunpack.c.l.s8.bf16 %v441
        %v598 = vunpack.c.l.s8.bf16 %v442
        %v599 = vunpack.c.h.s8.bf16 %v441
        %v600 = vunpack.c.h.s8.bf16 %v442
        %v601 = vunpack.c.l.s8.bf16 %v443
        %v602 = vunpack.c.l.s8.bf16 %v444
        %v603 = vunpack.c.h.s8.bf16 %v443
        %v604 = vunpack.c.h.s8.bf16 %v444
        %v605 = vunpack.c.l.s8.bf16 %v445
        %v606 = vunpack.c.l.s8.bf16 %v446
        %v607 = vunpack.c.h.s8.bf16 %v445
        %v608 = vunpack.c.h.s8.bf16 %v446
        %v609 = vunpack.c.l.s8.bf16 %v447
        %v610 = vunpack.c.l.s8.bf16 %v448
        %v611 = vunpack.c.h.s8.bf16 %v447
        %v612 = vunpack.c.h.s8.bf16 %v448
        %v613 = vunpack.c.l.s8.bf16 %v449
        %v614 = vunpack.c.l.s8.bf16 %v450
        %v615 = vunpack.c.h.s8.bf16 %v449
        %v616 = vunpack.c.h.s8.bf16 %v450
        %v617 = vunpack.c.l.s8.bf16 %v451
        %v618 = vunpack.c.l.s8.bf16 %v452
        %v619 = vunpack.c.h.s8.bf16 %v451
        %v620 = vunpack.c.h.s8.bf16 %v452
        %v621 = vunpack.c.l.s8.bf16 %v453
        %v622 = vunpack.c.l.s8.bf16 %v454
        %v623 = vunpack.c.h.s8.bf16 %v453
        %v624 = vunpack.c.h.s8.bf16 %v454
        %v625 = vunpack.c.l.s8.bf16 %v455
        %v626 = vunpack.c.l.s8.bf16 %v456
        %v627 = vunpack.c.h.s8.bf16 %v455
        %v628 = vunpack.c.h.s8.bf16 %v456
        %v629 = vunpack.c.l.s8.bf16 %v457
        %v630 = vunpack.c.l.s8.bf16 %v458
        %v631 = vunpack.c.h.s8.bf16 %v457
        %v632 = vunpack.c.h.s8.bf16 %v458
        %v633 = vunpack.c.l.s8.bf16 %v459
        %v634 = vunpack.c.l.s8.bf16 %v460
        %v635 = vunpack.c.h.s8.bf16 %v459
        %v636 = vunpack.c.h.s8.bf16 %v460
        %v637 = vunpack.c.l.s8.bf16 %v461
        %v638 = vunpack.c.l.s8.bf16 %v462
        %v639 = vunpack.c.h.s8.bf16 %v461
        %v640 = vunpack.c.h.s8.bf16 %v462
        %v641 = vunpack.c.l.s8.bf16 %v463
        %v642 = vunpack.c.l.s8.bf16 %v464
        %v643 = vunpack.c.h.s8.bf16 %v463
        %v644 = vunpack.c.h.s8.bf16 %v464
        %v645 = vunpack.c.l.s8.bf16 %v465
        %v646 = vunpack.c.l.s8.bf16 %v466
        %v647 = vunpack.c.h.s8.bf16 %v465
        %v648 = vunpack.c.h.s8.bf16 %v466
        %v649 = vunpack.c.l.s8.bf16 %v467
        %v650 = vunpack.c.l.s8.bf16 %v468
        %v651 = vunpack.c.h.s8.bf16 %v467
        %v652 = vunpack.c.h.s8.bf16 %v468
        %v653 = vunpack.c.l.s8.bf16 %v469
        %v654 = vunpack.c.l.s8.bf16 %v470
        %v655 = vunpack.c.h.s8.bf16 %v469
        %v656 = vunpack.c.h.s8.bf16 %v470
        %v657 = vunpack.c.l.s8.bf16 %v471
        %v658 = vunpack.c.l.s8.bf16 %v472
        %v659 = vunpack.c.h.s8.bf16 %v471
        %v660 = vunpack.c.h.s8.bf16 %v472
        %v661 = vunpack.c.l.s8.bf16 %v473
        %v662 = vunpack.c.l.s8.bf16 %v474
        %v663 = vunpack.c.h.s8.bf16 %v473
        %v664 = vunpack.c.h.s8.bf16 %v474
        %v665 = vunpack.c.l.s8.bf16 %v475
        %v666 = vunpack.c.l.s8.bf16 %v476
        %v667 = vunpack.c.h.s8.bf16 %v475
        %v668 = vunpack.c.h.s8.bf16 %v476
        %v669 = vld [vmem:[%s294] sm:$0xff]
        %v670 = vld [vmem:[%s294 + $0x8] sm:$0xff]
        %v671 = vld [vmem:[%s294 + $0x10] sm:$0xff]
        %v672 = vld [vmem:[%s294 + $0x18] sm:$0xff]
        %v673 = vld [vmem:[%s294 + $0x20] sm:$0xff]
        %v674 = vld [vmem:[%s294 + $0x28] sm:$0xff]
        %v693 = vunpack.c.l.b16 %v363
        %v694 = vunpack.c.h.b16 %v363
        %v695 = vunpack.c.l.b16 %v364
        %v696 = vunpack.c.h.b16 %v364
        %v697 = vunpack.c.l.b16 %v365
        %v698 = vunpack.c.h.b16 %v365
        %v699 = vunpack.c.l.b16 %v366
        %v700 = vunpack.c.h.b16 %v366
        %v701 = vunpack.c.l.b16 %v367
        %v702 = vunpack.c.h.b16 %v367
        %v703 = vunpack.c.l.b16 %v368
        %v704 = vunpack.c.h.b16 %v368
        %v705 = vunpack.c.l.b16 %v369
        %v706 = vunpack.c.h.b16 %v369
        %v707 = vunpack.c.l.b16 %v370
        %v708 = vunpack.c.h.b16 %v370
        %v709 = vunpack.c.l.b16 %v371
        %v710 = vunpack.c.h.b16 %v371
        %v711 = vunpack.c.l.b16 %v372
        %v712 = vunpack.c.h.b16 %v372
        %v713 = vunpack.c.l.b16 %v373
        %v714 = vunpack.c.h.b16 %v373
        %v715 = vunpack.c.l.b16 %v374
        %v716 = vunpack.c.h.b16 %v374
        %v717 = vunpack.c.l.b16 %v375
        %v718 = vunpack.c.h.b16 %v375
        %v719 = vunpack.c.l.b16 %v376
        %v720 = vunpack.c.h.b16 %v376
        %v721 = vunpack.c.l.b16 %v377
        %v722 = vunpack.c.h.b16 %v377
        %v723 = vunpack.c.l.b16 %v378
        %v724 = vunpack.c.h.b16 %v378
        %v725 = vunpack.c.l.b16 %v379
        %v726 = vunpack.c.h.b16 %v379
        %v727 = vunpack.c.l.b16 %v380
        %v728 = vunpack.c.h.b16 %v380
        %v729 = vpack.c.b16 %v705, %v693
        %v730 = vpack.c.b16 %v706, %v694
        %v731 = vpack.c.b16 %v707, %v695
        %v732 = vpack.c.b16 %v708, %v696
        %v733 = vpack.c.b16 %v709, %v697
        %v734 = vpack.c.b16 %v710, %v698
        %v735 = vpack.c.b16 %v711, %v699
        %v736 = vpack.c.b16 %v712, %v700
        %v737 = vpack.c.b16 %v713, %v701
        %v738 = vpack.c.b16 %v714, %v702
        %v739 = vpack.c.b16 %v715, %v703
        %v740 = vpack.c.b16 %v716, %v704
        %v741 = vpack.c.b16 %v717, %v717
        %v742 = vpack.c.b16 %v718, %v718
        %v743 = vpack.c.b16 %v719, %v719
        %v744 = vpack.c.b16 %v720, %v720
        %v745 = vpack.c.b16 %v721, %v721
        %v746 = vpack.c.b16 %v722, %v722
        %v747 = vpack.c.b16 %v723, %v723
        %v748 = vpack.c.b16 %v724, %v724
        %v749 = vpack.c.b16 %v725, %v725
        %v750 = vpack.c.b16 %v726, %v726
        %v751 = vpack.c.b16 %v727, %v727
        %v752 = vpack.c.b16 %v728, %v728
        %777 = vmatprep.subr.bf16.mxu0 %v478
        %778 = vmatpush1.bf16.msra.mxu0 %v477
        %779 = vmatprep.subr.bf16.mxu0 %v480
        %780 = vmatpush1.bf16.msra.mxu0 %v479
        %781 = vmatprep.subr.bf16.mxu0 %v482
        %782 = vmatpush1.bf16.msra.mxu0 %v481
        %783 = vmatprep.subr.bf16.mxu0 %v484
        %784 = vmatpush1.bf16.msra.mxu0 %v483
        %785 = vmatprep.subr.bf16.mxu0 %v486
        %786 = vmatpush1.bf16.msra.mxu0 %v485
        %787 = vmatprep.subr.bf16.mxu0 %v488
        %788 = vmatpush1.bf16.msra.mxu0 %v487
        %789 = vmatprep.subr.bf16.mxu0 %v490
        %790 = vmatpush1.bf16.msra.mxu0 %v489
        %791 = vmatprep.subr.bf16.mxu0 %v492
        %792 = vmatpush1.bf16.msra.mxu0 %v491
        %793 = vmatprep.subr.bf16.mxu0 %v494
        %794 = vmatpush1.bf16.msra.mxu0 %v493
        %795 = vmatprep.subr.bf16.mxu0 %v496
        %796 = vmatpush1.bf16.msra.mxu0 %v495
        %797 = vmatprep.subr.bf16.mxu0 %v498
        %798 = vmatpush1.bf16.msra.mxu0 %v497
        %799 = vmatprep.subr.bf16.mxu0 %v500
        %800 = vmatpush1.bf16.msra.mxu0 %v499
        %801 = vmatprep.subr.bf16.mxu0 %v502
        %802 = vmatpush1.bf16.msra.mxu0 %v501
        %803 = vmatprep.subr.bf16.mxu0 %v504
        %804 = vmatpush1.bf16.msra.mxu0 %v503
        %805 = vmatprep.subr.bf16.mxu0 %v506
        %806 = vmatpush1.bf16.msra.mxu0 %v505
        %807 = vmatprep.subr.bf16.mxu0 %v508
        %808 = vmatpush1.bf16.msra.mxu0 %v507
        %809 = vmatprep.mubr.bf16.mxu0 %v730
        %810 = vmatmul.mubr.bf16.gmra.mrb[0].mxu0 %v729
        %v811 = vpop.f32.mrb[0].mxu0
        %v812 = vadd.f32 0.0, %v811
        %v813 = vpop.f32.mrb[0].mxu0
        %v814 = vadd.f32 0.0, %v813
        %v815 = vpop.f32.mrb[0].mxu0
        %v816 = vadd.f32 0.0, %v815
        %v817 = vpop.f32.mrb[0].mxu0
        %v818 = vadd.f32 0.0, %v817
        %819 = vmatprep.mubr.bf16.mxu0 %v742
        %820 = vmatmul.mubr.bf16.gmra.mrb[0].mxu0 %v741
        %v821 = vpop.f32.mrb[0].mxu0
        %v822 = vadd.f32 0.0, %v821
        %v823 = vpop.f32.mrb[0].mxu0
        %v824 = vadd.f32 0.0, %v823
        %v825 = vpop.f32.mrb[0].mxu0
        %v826 = vpop.f32.mrb[0].mxu0
        %827 = vdwg.mxu0
        %828 = vmatprep.subr.bf16.mxu0 %v510
        %829 = vmatpush1.bf16.msra.mxu0 %v509
        %830 = vmatprep.subr.bf16.mxu0 %v512
        %831 = vmatpush1.bf16.msra.mxu0 %v511
        %832 = vmatprep.subr.bf16.mxu0 %v514
        %833 = vmatpush1.bf16.msra.mxu0 %v513
        %834 = vmatprep.subr.bf16.mxu0 %v516
        %835 = vmatpush1.bf16.msra.mxu0 %v515
        %836 = vmatprep.subr.bf16.mxu0 %v518
        %837 = vmatpush1.bf16.msra.mxu0 %v517
        %838 = vmatprep.subr.bf16.mxu0 %v520
        %839 = vmatpush1.bf16.msra.mxu0 %v519
        %840 = vmatprep.subr.bf16.mxu0 %v522
        %841 = vmatpush1.bf16.msra.mxu0 %v521
        %842 = vmatprep.subr.bf16.mxu0 %v524
        %843 = vmatpush1.bf16.msra.mxu0 %v523
        %844 = vmatprep.subr.bf16.mxu0 %v526
        %845 = vmatpush1.bf16.msra.mxu0 %v525
        %846 = vmatprep.subr.bf16.mxu0 %v528
        %847 = vmatpush1.bf16.msra.mxu0 %v527
        %848 = vmatprep.subr.bf16.mxu0 %v530
        %849 = vmatpush1.bf16.msra.mxu0 %v529
        %850 = vmatprep.subr.bf16.mxu0 %v532
        %851 = vmatpush1.bf16.msra.mxu0 %v531
        %852 = vmatprep.subr.bf16.mxu0 %v534
        %853 = vmatpush1.bf16.msra.mxu0 %v533
        %854 = vmatprep.subr.bf16.mxu0 %v536
        %855 = vmatpush1.bf16.msra.mxu0 %v535
        %856 = vmatprep.subr.bf16.mxu0 %v538
        %857 = vmatpush1.bf16.msra.mxu0 %v537
        %858 = vmatprep.subr.bf16.mxu0 %v540
        %859 = vmatpush1.bf16.msra.mxu0 %v539
        %860 = vmatprep.mubr.bf16.mxu0 %v732
        %861 = vmatmul.mubr.bf16.gmra.mrb[0].mxu0 %v731
        %v862 = vpop.f32.mrb[0].mxu0
        %v863 = vadd.f32 %v812, %v862
        %v864 = vpop.f32.mrb[0].mxu0
        %v865 = vadd.f32 %v814, %v864
        %v866 = vpop.f32.mrb[0].mxu0
        %v867 = vadd.f32 %v816, %v866
        %v868 = vpop.f32.mrb[0].mxu0
        %v869 = vadd.f32 %v818, %v868
        %870 = vmatprep.mubr.bf16.mxu0 %v744
        %871 = vmatmul.mubr.bf16.gmra.mrb[0].mxu0 %v743
        %v872 = vpop.f32.mrb[0].mxu0
        %v873 = vadd.f32 %v822, %v872
        %v874 = vpop.f32.mrb[0].mxu0
        %v875 = vadd.f32 %v824, %v874
        %v876 = vpop.f32.mrb[0].mxu0
        %v877 = vpop.f32.mrb[0].mxu0
        %878 = vdwg.mxu0
        %879 = vmatprep.subr.bf16.mxu0 %v542
        %880 = vmatpush1.bf16.msra.mxu0 %v541
        %881 = vmatprep.subr.bf16.mxu0 %v544
        %882 = vmatpush1.bf16.msra.mxu0 %v543
        %883 = vmatprep.subr.bf16.mxu0 %v546
        %884 = vmatpush1.bf16.msra.mxu0 %v545
        %885 = vmatprep.subr.bf16.mxu0 %v548
        %886 = vmatpush1.bf16.msra.mxu0 %v547
        %887 = vmatprep.subr.bf16.mxu0 %v550
        %888 = vmatpush1.bf16.msra.mxu0 %v549
        %889 = vmatprep.subr.bf16.mxu0 %v552
        %890 = vmatpush1.bf16.msra.mxu0 %v551
        %891 = vmatprep.subr.bf16.mxu0 %v554
        %892 = vmatpush1.bf16.msra.mxu0 %v553
        %893 = vmatprep.subr.bf16.mxu0 %v556
        %894 = vmatpush1.bf16.msra.mxu0 %v555
        %895 = vmatprep.subr.bf16.mxu0 %v558
        %896 = vmatpush1.bf16.msra.mxu0 %v557
        %897 = vmatprep.subr.bf16.mxu0 %v560
        %898 = vmatpush1.bf16.msra.mxu0 %v559
        %899 = vmatprep.subr.bf16.mxu0 %v562
        %900 = vmatpush1.bf16.msra.mxu0 %v561
        %901 = vmatprep.subr.bf16.mxu0 %v564
        %902 = vmatpush1.bf16.msra.mxu0 %v563
        %903 = vmatprep.subr.bf16.mxu0 %v566
        %904 = vmatpush1.bf16.msra.mxu0 %v565
        %905 = vmatprep.subr.bf16.mxu0 %v568
        %906 = vmatpush1.bf16.msra.mxu0 %v567
        %907 = vmatprep.subr.bf16.mxu0 %v570
        %908 = vmatpush1.bf16.msra.mxu0 %v569
        %909 = vmatprep.subr.bf16.mxu0 %v572
        %910 = vmatpush1.bf16.msra.mxu0 %v571
        %911 = vmatprep.mubr.bf16.mxu0 %v734
        %912 = vmatmul.mubr.bf16.gmra.mrb[0].mxu0 %v733
        %v913 = vpop.f32.mrb[0].mxu0
        %v914 = vadd.f32 %v863, %v913
        %v915 = vpop.f32.mrb[0].mxu0
        %v916 = vadd.f32 %v865, %v915
        %v917 = vpop.f32.mrb[0].mxu0
        %v918 = vadd.f32 %v867, %v917
        %v919 = vpop.f32.mrb[0].mxu0
        %v920 = vadd.f32 %v869, %v919
        %921 = vmatprep.mubr.bf16.mxu0 %v746
        %922 = vmatmul.mubr.bf16.gmra.mrb[0].mxu0 %v745
        %v923 = vpop.f32.mrb[0].mxu0
        %v924 = vadd.f32 %v873, %v923
        %v925 = vpop.f32.mrb[0].mxu0
        %v926 = vadd.f32 %v875, %v925
        %v927 = vpop.f32.mrb[0].mxu0
        %v928 = vpop.f32.mrb[0].mxu0
        %929 = vdwg.mxu0
        %930 = vmatprep.subr.bf16.mxu0 %v574
        %931 = vmatpush1.bf16.msra.mxu0 %v573
        %932 = vmatprep.subr.bf16.mxu0 %v576
        %933 = vmatpush1.bf16.msra.mxu0 %v575
        %934 = vmatprep.subr.bf16.mxu0 %v578
        %935 = vmatpush1.bf16.msra.mxu0 %v577
        %936 = vmatprep.subr.bf16.mxu0 %v580
        %937 = vmatpush1.bf16.msra.mxu0 %v579
        %938 = vmatprep.subr.bf16.mxu0 %v582
        %939 = vmatpush1.bf16.msra.mxu0 %v581
        %940 = vmatprep.subr.bf16.mxu0 %v584
        %941 = vmatpush1.bf16.msra.mxu0 %v583
        %942 = vmatprep.subr.bf16.mxu0 %v586
        %943 = vmatpush1.bf16.msra.mxu0 %v585
        %944 = vmatprep.subr.bf16.mxu0 %v588
        %945 = vmatpush1.bf16.msra.mxu0 %v587
        %946 = vmatprep.subr.bf16.mxu0 %v590
        %947 = vmatpush1.bf16.msra.mxu0 %v589
        %948 = vmatprep.subr.bf16.mxu0 %v592
        %949 = vmatpush1.bf16.msra.mxu0 %v591
        %950 = vmatprep.subr.bf16.mxu0 %v594
        %951 = vmatpush1.bf16.msra.mxu0 %v593
        %952 = vmatprep.subr.bf16.mxu0 %v596
        %953 = vmatpush1.bf16.msra.mxu0 %v595
        %954 = vmatprep.subr.bf16.mxu0 %v598
        %955 = vmatpush1.bf16.msra.mxu0 %v597
        %956 = vmatprep.subr.bf16.mxu0 %v600
        %957 = vmatpush1.bf16.msra.mxu0 %v599
        %958 = vmatprep.subr.bf16.mxu0 %v602
        %959 = vmatpush1.bf16.msra.mxu0 %v601
        %960 = vmatprep.subr.bf16.mxu0 %v604
        %961 = vmatpush1.bf16.msra.mxu0 %v603
        %962 = vmatprep.mubr.bf16.mxu0 %v736
        %963 = vmatmul.mubr.bf16.gmra.mrb[0].mxu0 %v735
        %v964 = vpop.f32.mrb[0].mxu0
        %v965 = vadd.f32 %v914, %v964
        %v966 = vpop.f32.mrb[0].mxu0
        %v967 = vadd.f32 %v916, %v966
        %v968 = vpop.f32.mrb[0].mxu0
        %v969 = vadd.f32 %v918, %v968
        %v970 = vpop.f32.mrb[0].mxu0
        %v971 = vadd.f32 %v920, %v970
        %972 = vmatprep.mubr.bf16.mxu0 %v748
        %973 = vmatmul.mubr.bf16.gmra.mrb[0].mxu0 %v747
        %v974 = vpop.f32.mrb[0].mxu0
        %v975 = vadd.f32 %v924, %v974
        %v976 = vpop.f32.mrb[0].mxu0
        %v977 = vadd.f32 %v926, %v976
        %v978 = vpop.f32.mrb[0].mxu0
        %v979 = vpop.f32.mrb[0].mxu0
        %980 = vdwg.mxu0
        %981 = vmatprep.subr.bf16.mxu0 %v606
        %982 = vmatpush1.bf16.msra.mxu0 %v605
        %983 = vmatprep.subr.bf16.mxu0 %v608
        %984 = vmatpush1.bf16.msra.mxu0 %v607
        %985 = vmatprep.subr.bf16.mxu0 %v610
        %986 = vmatpush1.bf16.msra.mxu0 %v609
        %987 = vmatprep.subr.bf16.mxu0 %v612
        %988 = vmatpush1.bf16.msra.mxu0 %v611
        %989 = vmatprep.subr.bf16.mxu0 %v614
        %990 = vmatpush1.bf16.msra.mxu0 %v613
        %991 = vmatprep.subr.bf16.mxu0 %v616
        %992 = vmatpush1.bf16.msra.mxu0 %v615
        %993 = vmatprep.subr.bf16.mxu0 %v618
        %994 = vmatpush1.bf16.msra.mxu0 %v617
        %995 = vmatprep.subr.bf16.mxu0 %v620
        %996 = vmatpush1.bf16.msra.mxu0 %v619
        %997 = vmatprep.subr.bf16.mxu0 %v622
        %998 = vmatpush1.bf16.msra.mxu0 %v621
        %999 = vmatprep.subr.bf16.mxu0 %v624
        %1000 = vmatpush1.bf16.msra.mxu0 %v623
        %1001 = vmatprep.subr.bf16.mxu0 %v626
        %1002 = vmatpush1.bf16.msra.mxu0 %v625
        %1003 = vmatprep.subr.bf16.mxu0 %v628
        %1004 = vmatpush1.bf16.msra.mxu0 %v627
        %1005 = vmatprep.subr.bf16.mxu0 %v630
        %1006 = vmatpush1.bf16.msra.mxu0 %v629
        %1007 = vmatprep.subr.bf16.mxu0 %v632
        %1008 = vmatpush1.bf16.msra.mxu0 %v631
        %1009 = vmatprep.subr.bf16.mxu0 %v634
        %1010 = vmatpush1.bf16.msra.mxu0 %v633
        %1011 = vmatprep.subr.bf16.mxu0 %v636
        %1012 = vmatpush1.bf16.msra.mxu0 %v635
        %1013 = vmatprep.mubr.bf16.mxu0 %v738
        %1014 = vmatmul.mubr.bf16.gmra.mrb[0].mxu0 %v737
        %v1015 = vpop.f32.mrb[0].mxu0
        %v1016 = vadd.f32 %v965, %v1015
        %v1017 = vpop.f32.mrb[0].mxu0
        %v1018 = vadd.f32 %v967, %v1017
        %v1019 = vpop.f32.mrb[0].mxu0
        %v1020 = vadd.f32 %v969, %v1019
        %v1021 = vpop.f32.mrb[0].mxu0
        %v1022 = vadd.f32 %v971, %v1021
        %1023 = vmatprep.mubr.bf16.mxu0 %v750
        %1024 = vmatmul.mubr.bf16.gmra.mrb[0].mxu0 %v749
        %v1025 = vpop.f32.mrb[0].mxu0
        %v1026 = vadd.f32 %v975, %v1025
        %v1027 = vpop.f32.mrb[0].mxu0
        %v1028 = vadd.f32 %v977, %v1027
        %v1029 = vpop.f32.mrb[0].mxu0
        %v1030 = vpop.f32.mrb[0].mxu0
        %1031 = vdwg.mxu0
        %1032 = vmatprep.subr.bf16.mxu0 %v638
        %1033 = vmatpush1.bf16.msra.mxu0 %v637
        %1034 = vmatprep.subr.bf16.mxu0 %v640
        %1035 = vmatpush1.bf16.msra.mxu0 %v639
        %1036 = vmatprep.subr.bf16.mxu0 %v642
        %1037 = vmatpush1.bf16.msra.mxu0 %v641
        %1038 = vmatprep.subr.bf16.mxu0 %v644
        %1039 = vmatpush1.bf16.msra.mxu0 %v643
        %1040 = vmatprep.subr.bf16.mxu0 %v646
        %1041 = vmatpush1.bf16.msra.mxu0 %v645
        %1042 = vmatprep.subr.bf16.mxu0 %v648
        %1043 = vmatpush1.bf16.msra.mxu0 %v647
        %1044 = vmatprep.subr.bf16.mxu0 %v650
        %1045 = vmatpush1.bf16.msra.mxu0 %v649
        %1046 = vmatprep.subr.bf16.mxu0 %v652
        %1047 = vmatpush1.bf16.msra.mxu0 %v651
        %1048 = vmatprep.subr.bf16.mxu0 %v654
        %1049 = vmatpush1.bf16.msra.mxu0 %v653
        %1050 = vmatprep.subr.bf16.mxu0 %v656
        %1051 = vmatpush1.bf16.msra.mxu0 %v655
        %1052 = vmatprep.subr.bf16.mxu0 %v658
        %1053 = vmatpush1.bf16.msra.mxu0 %v657
        %1054 = vmatprep.subr.bf16.mxu0 %v660
        %1055 = vmatpush1.bf16.msra.mxu0 %v659
        %1056 = vmatprep.subr.bf16.mxu0 %v662
        %1057 = vmatpush1.bf16.msra.mxu0 %v661
        %1058 = vmatprep.subr.bf16.mxu0 %v664
        %1059 = vmatpush1.bf16.msra.mxu0 %v663
        %1060 = vmatprep.subr.bf16.mxu0 %v666
        %1061 = vmatpush1.bf16.msra.mxu0 %v665
        %1062 = vmatprep.subr.bf16.mxu0 %v668
        %1063 = vmatpush1.bf16.msra.mxu0 %v667
        %1064 = vmatprep.mubr.bf16.mxu0 %v740
        %1065 = vmatmul.mubr.bf16.gmra.mrb[0].mxu0 %v739
        %v1066 = vpop.f32.mrb[0].mxu0
        %v1067 = vadd.f32 %v1016, %v1066
        %v1068 = vpop.f32.mrb[0].mxu0
        %v1069 = vadd.f32 %v1018, %v1068
        %v1070 = vpop.f32.mrb[0].mxu0
        %v1071 = vadd.f32 %v1020, %v1070
        %v1072 = vpop.f32.mrb[0].mxu0
        %v1073 = vadd.f32 %v1022, %v1072
        %1074 = vmatprep.mubr.bf16.mxu0 %v752
        %1075 = vmatmul.mubr.bf16.gmra.mrb[0].mxu0 %v751
        %v1076 = vpop.f32.mrb[0].mxu0
        %v1077 = vadd.f32 %v1026, %v1076
        %v1078 = vpop.f32.mrb[0].mxu0
        %v1079 = vadd.f32 %v1028, %v1078
        %v1080 = vpop.f32.mrb[0].mxu0
        %v1081 = vpop.f32.mrb[0].mxu0
        %1082 = vdwg.mxu0
        %v1083 = vadd.f32 %v669, %v1067
        %v1084 = vadd.f32 %v670, %v1069
        %v1085 = vadd.f32 %v671, %v1071
        %v1086 = vadd.f32 %v672, %v1073
        %v1087 = vadd.f32 %v673, %v1077
        %v1088 = vadd.f32 %v674, %v1079
        %1089 = vst [vmem:[%s294] sm:$0xff] %v1083
        %1090 = vst [vmem:[%s294 + $0x8] sm:$0xff] %v1084
        %1091 = vst [vmem:[%s294 + $0x10] sm:$0xff] %v1085
        %1092 = vst [vmem:[%s294 + $0x18] sm:$0xff] %v1086
        %1093 = vst [vmem:[%s294 + $0x20] sm:$0xff] %v1087
        %1094 = vst [vmem:[%s294 + $0x28] sm:$0xff] %v1088
        %s1095 = sand.u32 %s134, 1
        %s1096 = scalar_lea.sflag [#allocation4], %s1095
        %s1097 = sand.u32 %s134, 1
        %s1098 = smul.addr %s1097, 48
        %s1099 = scalar_lea.vmem [#allocation8], %s1098
        // Predicated region
        $region49: #{tpu_custom_call.1} parent=31 // pred_check
          %p1100 = pneg %p144
        $region50: #{tpu_custom_call.1} parent=31 // pred_check_branch
          %1102 = sbr.rel (%p1100) target = $region52
        $region51: #{tpu_custom_call.1} parent=31 // pred_region
          %s1103 = smul.u32 3, %s28
          %s1104 = smul.u32 2, %s29
          %s1106 = ssub.s32 768, 768
          %1107 = vsyncadd %s1096, %s1106
          %s1108 = smul.addr %s1103, 4
          %s1109 = sadd.s32 %s1104, %s1108
          %s1110 = smul.addr %s1109, 128
          %s1111 = scalar_lea.hbm %s3, %s1110
          %s1112 = sshll.u32 %s1099, 4
          %s1113 = int_to_ptr.vmem [resolvable:$true] %s1112
          %1118 = dma.vmem_to_hbm [thread:$0]  %s1113, 768, %s1111, %s1096, 256, 512, 16
        $region52: #{tpu_custom_call.1} parent=31 // pred_fallthru
          _
      $region32: #{tpu_custom_call.1} parent=5 // pred_fallthru
        _
      %p1119 = scmp.le.s32.totalorder 2, %s18
      // Predicated region
      $region53: #{tpu_custom_call.1} parent=5 // pred_check
        %p1120 = pneg %p1119
      $region54: #{tpu_custom_call.1} parent=5 // pred_check_branch
        %1122 = sbr.rel (%p1120) target = $region56
      $region55: #{tpu_custom_call.1} parent=5 // pred_region
        %s1123 = ssub.s32 %s18, 2
        // Predicated region
        $region57: #{tpu_custom_call.1} parent=55 // pred_check
          %p1124 = pneg %p150
        $region58: #{tpu_custom_call.1} parent=55 // pred_check_branch
          %1126 = sbr.rel (%p1124) target = $region60
        $region59: #{tpu_custom_call.1} parent=55 // pred_region
          %s1127 = sand.u32 %s135, 1
          %s1128 = scalar_lea.sflag [#allocation4], %s1127
          %s1129 = sand.u32 %s135, 1
          %s1130 = smul.addr %s1129, 48
          %s1131 = scalar_lea.vmem [#allocation8], %s1130
          %1132 = dma.done %s1128, 768
        $region60: #{tpu_custom_call.1} parent=55 // pred_fallthru
          _
      $region56: #{tpu_custom_call.1} parent=5 // pred_fallthru
        _
    $region6: #{tpu_custom_call.1} parent=1 // loop_footer
      %s22 = sadd.s32 1, %s18
    $region7: #{tpu_custom_call.1} parent=1 // loop_footer_branch
      %17 = sbr.rel target = $region3
    $region8: #{tpu_custom_call.1} parent=1 // loop_exit
      _
    %1133 = vsyncpa [#allocation3], 1
    %s1134 = scalar_lea.sflag [#allocation3], 1
    %1135 = vsyncpa %s1134, 1
    %1136 = vsyncpa [#allocation6], 1
    %s1137 = scalar_lea.sflag [#allocation6], 1
    %1138 = vsyncpa %s1137, 1
    %1139 = vsyncpa [#allocation4], 1
    %s1140 = scalar_lea.sflag [#allocation4], 1
    %1141 = vsyncpa %s1140, 1

</llo_original>
